<compile_context>
chip_gen: v5e
topology: v5e:2x2
jax: 0.10.0
libtpu: 0.0.40
codegen_flags: <defaults>
</compile_context>

<pallas_src>
import functools

import jax
import jax.numpy as jnp
from jax.experimental import pallas as pl
from jax.experimental.pallas import tpu as pltpu

_EPS = 1e-5
_LANE = 128
_FRONT = 8          # front L-halo rows (8 => pass-3 residual slice is sublane-aligned)
_BACK = 2           # back L-halo rows (conv needs x[l+1] up to the helper row l = L)
_MAX_BATCH_BLOCK = 8


def _round_up(n, m=_LANE):
    return ((n + m - 1) // m) * m


def _vmem_limit_bytes():
    """Generation-aware scoped-VMEM limit (v5e/v6e: 128 MiB phys, v7x: 64 MiB/TC)."""
    try:
        cap = int(pltpu.get_tpu_info().vmem_capacity_bytes)
    except Exception:                       # fall back to the most conservative gen
        cap = 64 * 1024 * 1024
    return int(min(max(cap * 3 // 4, 32 * 1024 * 1024), 96 * 1024 * 1024))


def _pick_batch_block(n, l, cin_p, cout_p, vmem_limit):
    """Largest divisor of N (<= _MAX_BATCH_BLOCK) whose working set fits ~VMEM/2."""
    per_elem = (l + _FRONT + _BACK) * (12 * cin_p + 24 * cout_p)   # rough bytes/elem
    cap = max(1, min(_MAX_BATCH_BLOCK, (vmem_limit // 2) // max(per_elem, 1)))
    b = 1
    for d in range(1, n + 1):
        if n % d == 0 and d <= cap:
            b = d
    return b


# --------------------------------------------------------------------------- #
# In-kernel helpers
# --------------------------------------------------------------------------- #
def _conv3_2d(x_bf16, w_ref, lo, length):
    """k=3 conv as three accumulating bf16 MXU matmuls (no tap concatenation).

    x_bf16 : (Lp, Cin_p) bf16 (already cast once)
    w_ref  : (3, Cin_p, Cout_p) bf16, tap t multiplies x[l - 1 + t]
    Returns (length, Cout_p) f32: output rows lo+1-_FRONT .. (in x_p coordinates).
    """
    y = jnp.dot(x_bf16[lo:lo + length], w_ref[0], preferred_element_type=jnp.float32)
    y += jnp.dot(x_bf16[lo + 1:lo + 1 + length], w_ref[1],
                 preferred_element_type=jnp.float32)
    y += jnp.dot(x_bf16[lo + 2:lo + 2 + length], w_ref[2],
                 preferred_element_type=jnp.float32)
    return y


def _stat_store(ref, v):
    """Write a (1, C) per-step partial into a sublane-aligned (1, 8, C) block."""
    ref[...] = jnp.broadcast_to(v.reshape(1, 1, -1), ref.shape)


# --------------------------------------------------------------------------- #
# Kernels
# --------------------------------------------------------------------------- #
def _conv1_stats_kernel(x_ref, w1_ref, s_ref, ss_ref):
    """Pass 1: conv1 (bf16 MXU) + BN1 partial sum / sum-of-squares for this block.

    x_ref : (B, FRONT+L+BACK, Cin_p) f32
    w1_ref: (3, Cin_p, Cout_p) bf16
    s_ref, ss_ref: (1, 8, Cout_p) f32 per-step partials (row 0 is the payload)
    """
    B, lp, _ = x_ref.shape
    L = lp - _FRONT - _BACK
    s = None
    ss = None
    for b in range(B):                                   # static unroll over the block
        x = x_ref[b].astype(jnp.bfloat16)                # cast once per element
        y = _conv3_2d(x, w1_ref, _FRONT - 1, L)          # conv1 at positions 0..L-1
        sb = jnp.sum(y, axis=0, keepdims=True)
        ssb = jnp.sum(y * y, axis=0, keepdims=True)
        s = sb if s is None else s + sb
        ss = ssb if ss is None else ss + ssb
    _stat_store(s_ref, s)
    _stat_store(ss_ref, ss)


def _bn1_conv2_stats_kernel(x_ref, w1_ref, sc1_ref, sh1_ref, w2_ref,
                            y2_ref, s_ref, ss_ref):
    """Pass 2: recompute conv1, BN1 affine + ReLU, conv2, BN2 partial stats.

    Recomputing conv1 here removes the y1 HBM round-trip entirely; y2 is written
    as bf16 to halve the remaining intermediate traffic.
    """
    B, lp, _ = x_ref.shape
    L = lp - _FRONT - _BACK
    sc1 = sc1_ref[...]                                   # (1, Cout_p), hoisted
    sh1 = sh1_ref[...]
    s = jnp.zeros_like(sc1)
    ss = jnp.zeros_like(sc1)
    for b in range(B):
        x = x_ref[b].astype(jnp.bfloat16)
        # conv1 at positions -1..L (L+2 rows); the two helper rows become conv2's
        # zero padding below.
        h = _conv3_2d(x, w1_ref, _FRONT - 2, L + 2)
        h = jnp.maximum(h * sc1 + sh1, 0.0)
        pos = jax.lax.broadcasted_iota(jnp.int32, h.shape, 0)
        h = jnp.where((pos >= 1) & (pos <= L), h, 0.0)   # zero rows 0 and L+1
        y = _conv3_2d(h.astype(jnp.bfloat16), w2_ref, 0, L)   # conv2 at 0..L-1
        s += jnp.sum(y, axis=0, keepdims=True)
        ss += jnp.sum(y * y, axis=0, keepdims=True)
        y2_ref[b] = y.astype(y2_ref.dtype)               # bf16 intermediate store
    _stat_store(s_ref, s)
    _stat_store(ss_ref, ss)


def _bn2_residual_kernel(use_downsample, *refs):
    """Pass 3: BN2 affine + residual (identity or 1x1 downsample conv) + ReLU."""
    if use_downsample:
        y2_ref, sc2_ref, sh2_ref, x_ref, wd_ref, bd_ref, o_ref = refs
    else:
        y2_ref, sc2_ref, sh2_ref, x_ref, o_ref = refs
    B, L, _ = y2_ref.shape
    sc2 = sc2_ref[...]
    sh2 = sh2_ref[...]
    for b in range(B):
        out = y2_ref[b].astype(jnp.float32) * sc2 + sh2
        xv = x_ref[b][_FRONT:_FRONT + L, :]              # offset 8 -> aligned slice
        if use_downsample:
            res = jnp.dot(xv.astype(jnp.bfloat16), wd_ref[...],
                          preferred_element_type=jnp.float32) + bd_ref[...]
        else:
            res = xv
        o_ref[b] = jnp.maximum(out + res, 0.0).astype(o_ref.dtype)


# --------------------------------------------------------------------------- #
# Wrapper
# --------------------------------------------------------------------------- #
def _bn_affine(s, ss, gamma, beta, count):
    """Fold training-mode BatchNorm1d into a per-channel scale/shift (f32)."""
    mean = s / count
    var = jnp.maximum(ss / count - mean * mean, 0.0)     # biased variance
    scale = gamma * jax.lax.rsqrt(var + _EPS)
    return scale, beta - mean * scale


def residual_block_forward_nlc(x_nlc, params):
    """x_nlc: (N, L, Cin) float32 (channels-last). Returns (N, L, Cout) float32."""
    N, L, Cin = x_nlc.shape
    Cout = params["w1"].shape[0]
    use_ds = Cin != Cout
    cin_p, cout_p = _round_up(Cin), _round_up(Cout)
    f32, bf16 = jnp.float32, jnp.bfloat16

    vmem_limit = _vmem_limit_bytes()
    b_blk = _pick_batch_block(N, L, cin_p, cout_p, vmem_limit)
    G = N // b_blk
    Lp = _FRONT + L + _BACK

    # One wrapper-side copy: lane-dense channel padding + aligned L halos.
    x_p = jnp.pad(x_nlc.astype(f32), ((0, 0), (_FRONT, _BACK), (0, cin_p - Cin)))

    def pack_conv(w, ci_p, co_p):
        co, ci, _k = w.shape
        w = jnp.transpose(w, (2, 1, 0)).astype(f32)              # (3, Cin, Cout)
        w = jnp.pad(w, ((0, 0), (0, ci_p - ci), (0, co_p - co)))
        return w.astype(bf16)                                    # (3, ci_p, co_p)

    def pad_vec(v, c_p):
        return jnp.pad(v.astype(f32), (0, c_p - v.shape[0])).reshape(1, c_p)

    w1 = pack_conv(params["w1"], cin_p, cout_p)
    w2 = pack_conv(params["w2"], cout_p, cout_p)
    g1, be1 = pad_vec(params["g1"], cout_p), pad_vec(params["be1"], cout_p)
    g2, be2 = pad_vec(params["g2"], cout_p), pad_vec(params["be2"], cout_p)
    # NOTE: conv biases b1/b2 are intentionally NOT passed to the kernels: a bias
    # followed by training-mode BatchNorm cancels exactly (mean subtraction).

    cparams = pltpu.CompilerParams(
        dimension_semantics=("parallel",),          # every pass megacore-shardable
        vmem_limit_bytes=vmem_limit)

    stat_spec = pl.BlockSpec((1, 8, cout_p), lambda i: (i, 0, 0))
    stat_shape = jax.ShapeDtypeStruct((G, 8, cout_p), f32)

    # ---- pass 1: conv1 + BN1 partial sum/sumsq ------------------------------ #
    s1p, ss1p = pl.pallas_call(
        _conv1_stats_kernel,
        grid=(G,),
        in_specs=[pl.BlockSpec((b_blk, Lp, cin_p), lambda i: (i, 0, 0)),
                  pl.BlockSpec((3, cin_p, cout_p), lambda i: (0, 0, 0))],
        out_specs=[stat_spec, stat_spec],
        out_shape=[stat_shape, stat_shape],
        compiler_params=cparams,
    )(x_p, w1)
    s1 = jnp.sum(s1p[:, 0, :], axis=0, keepdims=True)
    ss1 = jnp.sum(ss1p[:, 0, :], axis=0, keepdims=True)
    sc1, sh1 = _bn_affine(s1, ss1, g1, be1, N * L)

    # ---- pass 2: conv1 (recompute) + BN1 + ReLU + conv2 + BN2 partial stats - #
    y2, s2p, ss2p = pl.pallas_call(
        _bn1_conv2_stats_kernel,
        grid=(G,),
        in_specs=[pl.BlockSpec((b_blk, Lp, cin_p), lambda i: (i, 0, 0)),
                  pl.BlockSpec((3, cin_p, cout_p), lambda i: (0, 0, 0)),
                  pl.BlockSpec((1, cout_p), lambda i: (0, 0)),
                  pl.BlockSpec((1, cout_p), lambda i: (0, 0)),
                  pl.BlockSpec((3, cout_p, cout_p), lambda i: (0, 0, 0))],
        out_specs=[pl.BlockSpec((b_blk, L, cout_p), lambda i: (i, 0, 0)),
                   stat_spec, stat_spec],
        out_shape=[jax.ShapeDtypeStruct((N, L, cout_p), bf16),
                   stat_shape, stat_shape],
        compiler_params=cparams,
    )(x_p, w1, sc1, sh1, w2)
    s2 = jnp.sum(s2p[:, 0, :], axis=0, keepdims=True)
    ss2 = jnp.sum(ss2p[:, 0, :], axis=0, keepdims=True)
    sc2, sh2 = _bn_affine(s2, ss2, g2, be2, N * L)

    # ---- pass 3: BN2 affine + residual (+ 1x1 downsample) + ReLU ------------ #
    args = [y2, sc2, sh2, x_p]
    in_specs = [pl.BlockSpec((b_blk, L, cout_p), lambda i: (i, 0, 0)),
                pl.BlockSpec((1, cout_p), lambda i: (0, 0)),
                pl.BlockSpec((1, cout_p), lambda i: (0, 0)),
                pl.BlockSpec((b_blk, Lp, cin_p), lambda i: (i, 0, 0))]
    if use_ds:
        wd = jnp.pad(jnp.transpose(params["wd"][:, :, 0], (1, 0)).astype(f32),
                     ((0, cin_p - Cin), (0, cout_p - Cout))).astype(bf16)
        args += [wd, pad_vec(params["bd"], cout_p)]
        in_specs += [pl.BlockSpec((cin_p, cout_p), lambda i: (0, 0)),
                     pl.BlockSpec((1, cout_p), lambda i: (0, 0))]

    out_p = pl.pallas_call(
        functools.partial(_bn2_residual_kernel, use_ds),
        grid=(G,),
        in_specs=in_specs,
        out_specs=pl.BlockSpec((b_blk, L, cout_p), lambda i: (i, 0, 0)),
        out_shape=jax.ShapeDtypeStruct((N, L, cout_p), f32),
        compiler_params=cparams,
    )(*args)

    # If the downstream consumer accepts the 128-padded channel layout, return
    # out_p directly and skip this extra HBM pass.
    return out_p[:, :, :Cout]


def residual_block_forward(x_ncl, params):
    """PyTorch-layout entry point: x_ncl (N, Cin, L) -> (N, Cout, L)."""
    out_nlc = residual_block_forward_nlc(jnp.transpose(x_ncl, (0, 2, 1)), params)
    return jnp.transpose(out_nlc, (0, 2, 1))


# --------------------------------------------------------------------------- #
# Pure-JAX reference (PyTorch NCL semantics, includes the conv biases) + params
# --------------------------------------------------------------------------- #
def _reference(x_ncl, params):
    def conv1d(x, w, b, pad):
        y = jax.lax.conv_general_dilated(
            x, w, window_strides=(1,), padding=[(pad, pad)],
            dimension_numbers=("NCH", "OIH", "NCH"))
        return y + b[None, :, None]

    def bn(x, g, be):
        mean = x.mean(axis=(0, 2), keepdims=True)
        var = ((x - mean) ** 2).mean(axis=(0, 2), keepdims=True)
        return (x - mean) * jax.lax.rsqrt(var + _EPS) * g[None, :, None] + be[None, :, None]

    out = jax.nn.relu(bn(conv1d(x_ncl, params["w1"], params["b1"], 1),
                         params["g1"], params["be1"]))
    out = bn(conv1d(out, params["w2"], params["b2"], 1),
             params["g2"], params["be2"])
    res = x_ncl
    if "wd" in params:
        res = conv1d(x_ncl, params["wd"], params["bd"], 0)
    return jax.nn.relu(out + res)


def make_params(key, in_channels, out_channels, kernel_size=3):
    ks = jax.random.split(key, 6)
    params = {
        "w1": 0.1 * jax.random.normal(ks[0], (out_channels, in_channels, kernel_size), jnp.float32),
        "b1": 0.1 * jax.random.normal(ks[1], (out_channels,), jnp.float32),
        "g1": jnp.ones((out_channels,), jnp.float32),
        "be1": jnp.zeros((out_channels,), jnp.float32),
        "w2": 0.1 * jax.random.normal(ks[2], (out_channels, out_channels, kernel_size), jnp.float32),
        "b2": 0.1 * jax.random.normal(ks[3], (out_channels,), jnp.float32),
        "g2": jnp.ones((out_channels,), jnp.float32),
        "be2": jnp.zeros((out_channels,), jnp.float32),
    }
    if in_channels != out_channels:
        params["wd"] = 0.1 * jax.random.normal(ks[4], (out_channels, in_channels, 1), jnp.float32)
        params["bd"] = 0.1 * jax.random.normal(ks[5], (out_channels,), jnp.float32)
    return params


if __name__ == "__main__":
    key = jax.random.PRNGKey(0)
    kx, kp1, kp2 = jax.random.split(key, 3)

    # Case 1: Cin != Cout -> 1x1-conv downsample residual branch.
    N, C_IN, C_OUT, L = 2, 4, 8, 16
    x = jax.random.normal(kx, (N, C_IN, L), jnp.float32)
    params = make_params(kp1, C_IN, C_OUT)
    out = jax.block_until_ready(residual_block_forward(x, params))
    ref = jax.block_until_ready(_reference(x, params))
    assert out.shape == (N, C_OUT, L)
    err = float(jnp.max(jnp.abs(out - ref)))
    assert jnp.allclose(out, ref, rtol=2e-2, atol=2e-2), f"downsample path mismatch, max|diff|={err:.4e}"

    # Case 2: Cin == Cout -> identity residual branch.
    x2 = jax.random.normal(kx, (N, C_OUT, L), jnp.float32)
    params2 = make_params(kp2, C_OUT, C_OUT)
    out2 = jax.block_until_ready(residual_block_forward(x2, params2))
    ref2 = jax.block_until_ready(_reference(x2, params2))
    err2 = float(jnp.max(jnp.abs(out2 - ref2)))
    assert jnp.allclose(out2, ref2, rtol=2e-2, atol=2e-2), f"identity path mismatch, max|diff|={err2:.4e}"

    print("KERNEL_OK")
</pallas_src>

<mosaic_0001>
module attributes {stable_mosaic.version = 11 : i64} {
  func.func @_conv1_stats_kernel(%arg0: i32, %arg1: memref<2x26x128xf32, #tpu.memory_space<vmem>>, %arg2: memref<3x128x128xbf16, #tpu.memory_space<vmem>>, %arg3: memref<1x8x128xf32, #tpu.memory_space<vmem>>, %arg4: memref<1x8x128xf32, #tpu.memory_space<vmem>>) attributes {dimension_semantics = [#tpu.dimension_semantics<parallel>], iteration_bounds = array<i64: 1>, scalar_prefetch = 0 : i64, scratch_operands = 0 : i64, tpu.core_type = #tpu.core_type<tc>, window_params = [{transform_indices = @transform_0, window_bounds = array<i64: 2, 26, 128>}, {pipeline_mode = #tpu.pipeline_mode<synchronous>, transform_indices = @transform_1, window_bounds = array<i64: 3, 128, 128>}, {transform_indices = @transform_2, window_bounds = array<i64: 1, 8, 128>}, {transform_indices = @transform_3, window_bounds = array<i64: 1, 8, 128>}]} {
    %c0 = arith.constant 0 : index
    %c0_0 = arith.constant 0 : index
    %c0_1 = arith.constant 0 : index
    %0 = vector.load %arg1[%c0, %c0_0, %c0_1] : memref<2x26x128xf32, #tpu.memory_space<vmem>>, vector<1x26x128xf32>
    %1 = vector.shape_cast %0 : vector<1x26x128xf32> to vector<26x128xf32>
    %2 = arith.truncf %1 : vector<26x128xf32> to vector<26x128xbf16>
    %3 = vector.extract_strided_slice %2 {offsets = [7, 0], sizes = [16, 128], strides = [1, 1]} : vector<26x128xbf16> to vector<16x128xbf16>
    %c0_2 = arith.constant 0 : index
    %c0_3 = arith.constant 0 : index
    %c0_4 = arith.constant 0 : index
    %4 = vector.load %arg2[%c0_2, %c0_3, %c0_4] : memref<3x128x128xbf16, #tpu.memory_space<vmem>>, vector<1x128x128xbf16>
    %5 = vector.shape_cast %4 : vector<1x128x128xbf16> to vector<128x128xbf16>
    %cst = arith.constant dense<0.000000e+00> : vector<16x128xf32>
    %6 = tpu.matmul %3, %5, %cst {dimension_numbers = #tpu.dot_dimension_numbers<[1], [0], [0], [1], [0, 0, 1, 1], [], []>} : vector<16x128xbf16>, vector<128x128xbf16>, vector<16x128xf32> -> vector<16x128xf32>
    %7 = vector.extract_strided_slice %2 {offsets = [8, 0], sizes = [16, 128], strides = [1, 1]} : vector<26x128xbf16> to vector<16x128xbf16>
    %c1 = arith.constant 1 : index
    %c0_5 = arith.constant 0 : index
    %c0_6 = arith.constant 0 : index
    %8 = vector.load %arg2[%c1, %c0_5, %c0_6] : memref<3x128x128xbf16, #tpu.memory_space<vmem>>, vector<1x128x128xbf16>
    %9 = vector.shape_cast %8 : vector<1x128x128xbf16> to vector<128x128xbf16>
    %cst_7 = arith.constant dense<0.000000e+00> : vector<16x128xf32>
    %10 = tpu.matmul %7, %9, %cst_7 {dimension_numbers = #tpu.dot_dimension_numbers<[1], [0], [0], [1], [0, 0, 1, 1], [], []>} : vector<16x128xbf16>, vector<128x128xbf16>, vector<16x128xf32> -> vector<16x128xf32>
    %11 = arith.addf %6, %10 : vector<16x128xf32>
    %12 = vector.extract_strided_slice %2 {offsets = [9, 0], sizes = [16, 128], strides = [1, 1]} : vector<26x128xbf16> to vector<16x128xbf16>
    %c2 = arith.constant 2 : index
    %c0_8 = arith.constant 0 : index
    %c0_9 = arith.constant 0 : index
    %13 = vector.load %arg2[%c2, %c0_8, %c0_9] : memref<3x128x128xbf16, #tpu.memory_space<vmem>>, vector<1x128x128xbf16>
    %14 = vector.shape_cast %13 : vector<1x128x128xbf16> to vector<128x128xbf16>
    %cst_10 = arith.constant dense<0.000000e+00> : vector<16x128xf32>
    %15 = tpu.matmul %12, %14, %cst_10 {dimension_numbers = #tpu.dot_dimension_numbers<[1], [0], [0], [1], [0, 0, 1, 1], [], []>} : vector<16x128xbf16>, vector<128x128xbf16>, vector<16x128xf32> -> vector<16x128xf32>
    %16 = arith.addf %11, %15 : vector<16x128xf32>
    %cst_11 = arith.constant dense<0.000000e+00> : vector<128xf32>
    %17 = vector.multi_reduction <add>, %16, %cst_11 [0] : vector<16x128xf32> to vector<128xf32>
    %18 = vector.shape_cast %17 : vector<128xf32> to vector<1x128xf32>
    %19 = arith.mulf %16, %16 : vector<16x128xf32>
    %cst_12 = arith.constant dense<0.000000e+00> : vector<128xf32>
    %20 = vector.multi_reduction <add>, %19, %cst_12 [0] : vector<16x128xf32> to vector<128xf32>
    %21 = vector.shape_cast %20 : vector<128xf32> to vector<1x128xf32>
    %c1_13 = arith.constant 1 : index
    %c0_14 = arith.constant 0 : index
    %c0_15 = arith.constant 0 : index
    %22 = vector.load %arg1[%c1_13, %c0_14, %c0_15] : memref<2x26x128xf32, #tpu.memory_space<vmem>>, vector<1x26x128xf32>
    %23 = vector.shape_cast %22 : vector<1x26x128xf32> to vector<26x128xf32>
    %24 = arith.truncf %23 : vector<26x128xf32> to vector<26x128xbf16>
    %25 = vector.extract_strided_slice %24 {offsets = [7, 0], sizes = [16, 128], strides = [1, 1]} : vector<26x128xbf16> to vector<16x128xbf16>
    %c0_16 = arith.constant 0 : index
    %c0_17 = arith.constant 0 : index
    %c0_18 = arith.constant 0 : index
    %26 = vector.load %arg2[%c0_16, %c0_17, %c0_18] : memref<3x128x128xbf16, #tpu.memory_space<vmem>>, vector<1x128x128xbf16>
    %27 = vector.shape_cast %26 : vector<1x128x128xbf16> to vector<128x128xbf16>
    %cst_19 = arith.constant dense<0.000000e+00> : vector<16x128xf32>
    %28 = tpu.matmul %25, %27, %cst_19 {dimension_numbers = #tpu.dot_dimension_numbers<[1], [0], [0], [1], [0, 0, 1, 1], [], []>} : vector<16x128xbf16>, vector<128x128xbf16>, vector<16x128xf32> -> vector<16x128xf32>
    %29 = vector.extract_strided_slice %24 {offsets = [8, 0], sizes = [16, 128], strides = [1, 1]} : vector<26x128xbf16> to vector<16x128xbf16>
    %c1_20 = arith.constant 1 : index
    %c0_21 = arith.constant 0 : index
    %c0_22 = arith.constant 0 : index
    %30 = vector.load %arg2[%c1_20, %c0_21, %c0_22] : memref<3x128x128xbf16, #tpu.memory_space<vmem>>, vector<1x128x128xbf16>
    %31 = vector.shape_cast %30 : vector<1x128x128xbf16> to vector<128x128xbf16>
    %cst_23 = arith.constant dense<0.000000e+00> : vector<16x128xf32>
    %32 = tpu.matmul %29, %31, %cst_23 {dimension_numbers = #tpu.dot_dimension_numbers<[1], [0], [0], [1], [0, 0, 1, 1], [], []>} : vector<16x128xbf16>, vector<128x128xbf16>, vector<16x128xf32> -> vector<16x128xf32>
    %33 = arith.addf %28, %32 : vector<16x128xf32>
    %34 = vector.extract_strided_slice %24 {offsets = [9, 0], sizes = [16, 128], strides = [1, 1]} : vector<26x128xbf16> to vector<16x128xbf16>
    %c2_24 = arith.constant 2 : index
    %c0_25 = arith.constant 0 : index
    %c0_26 = arith.constant 0 : index
    %35 = vector.load %arg2[%c2_24, %c0_25, %c0_26] : memref<3x128x128xbf16, #tpu.memory_space<vmem>>, vector<1x128x128xbf16>
    %36 = vector.shape_cast %35 : vector<1x128x128xbf16> to vector<128x128xbf16>
    %cst_27 = arith.constant dense<0.000000e+00> : vector<16x128xf32>
    %37 = tpu.matmul %34, %36, %cst_27 {dimension_numbers = #tpu.dot_dimension_numbers<[1], [0], [0], [1], [0, 0, 1, 1], [], []>} : vector<16x128xbf16>, vector<128x128xbf16>, vector<16x128xf32> -> vector<16x128xf32>
    %38 = arith.addf %33, %37 : vector<16x128xf32>
    %cst_28 = arith.constant dense<0.000000e+00> : vector<128xf32>
    %39 = vector.multi_reduction <add>, %38, %cst_28 [0] : vector<16x128xf32> to vector<128xf32>
    %40 = vector.shape_cast %39 : vector<128xf32> to vector<1x128xf32>
    %41 = arith.mulf %38, %38 : vector<16x128xf32>
    %cst_29 = arith.constant dense<0.000000e+00> : vector<128xf32>
    %42 = vector.multi_reduction <add>, %41, %cst_29 [0] : vector<16x128xf32> to vector<128xf32>
    %43 = vector.shape_cast %42 : vector<128xf32> to vector<1x128xf32>
    %44 = arith.addf %18, %40 : vector<1x128xf32>
    %45 = arith.addf %21, %43 : vector<1x128xf32>
    %46 = vector.shape_cast %44 : vector<1x128xf32> to vector<1x1x128xf32>
    %47 = vector.shape_cast %46 : vector<1x1x128xf32> to vector<1x1x128xf32>
    %48 = vector.broadcast %47 : vector<1x1x128xf32> to vector<1x8x128xf32>
    %c0_30 = arith.constant 0 : index
    %c0_31 = arith.constant 0 : index
    %c0_32 = arith.constant 0 : index
    %49 = vector.load %arg3[%c0_30, %c0_31, %c0_32] : memref<1x8x128xf32, #tpu.memory_space<vmem>>, vector<1x8x128xf32>
    tpu.vector_store %arg3[%c0_30, %c0_31, %c0_32], %48 {strides = array<i32>} : memref<1x8x128xf32, #tpu.memory_space<vmem>>, vector<1x8x128xf32>,
    %50 = vector.shape_cast %45 : vector<1x128xf32> to vector<1x1x128xf32>
    %51 = vector.shape_cast %50 : vector<1x1x128xf32> to vector<1x1x128xf32>
    %52 = vector.broadcast %51 : vector<1x1x128xf32> to vector<1x8x128xf32>
    %c0_33 = arith.constant 0 : index
    %c0_34 = arith.constant 0 : index
    %c0_35 = arith.constant 0 : index
    %53 = vector.load %arg4[%c0_33, %c0_34, %c0_35] : memref<1x8x128xf32, #tpu.memory_space<vmem>>, vector<1x8x128xf32>
    tpu.vector_store %arg4[%c0_33, %c0_34, %c0_35], %52 {strides = array<i32>} : memref<1x8x128xf32, #tpu.memory_space<vmem>>, vector<1x8x128xf32>,
    return
  }
  func.func @transform_0(%arg0: i32) -> (i32, i32, i32) {
    %c0_i32 = arith.constant 0 : i32
    %c0_i32_0 = arith.constant 0 : i32
    %c0_i32_1 = arith.constant 0 : i32
    return %arg0, %c0_i32, %c0_i32_0 : i32, i32, i32
  }
  func.func @transform_1(%arg0: i32) -> (i32, i32, i32) {
    %c0_i32 = arith.constant 0 : i32
    %c0_i32_0 = arith.constant 0 : i32
    %c0_i32_1 = arith.constant 0 : i32
    %c0_i32_2 = arith.constant 0 : i32
    return %c0_i32, %c0_i32_0, %c0_i32_1 : i32, i32, i32
  }
  func.func @transform_2(%arg0: i32) -> (i32, i32, i32) {
    %c0_i32 = arith.constant 0 : i32
    %c0_i32_0 = arith.constant 0 : i32
    %c0_i32_1 = arith.constant 0 : i32
    return %arg0, %c0_i32, %c0_i32_0 : i32, i32, i32
  }
  func.func @transform_3(%arg0: i32) -> (i32, i32, i32) {
    %c0_i32 = arith.constant 0 : i32
    %c0_i32_0 = arith.constant 0 : i32
    %c0_i32_1 = arith.constant 0 : i32
    return %arg0, %c0_i32, %c0_i32_0 : i32, i32, i32
  }
}

</mosaic_0001>

<llo_original>
// kernel: tpu_custom_call.1
$region0: #{tpu_custom_call.1}
  #allocation0 [shape = 'u32[]', space=smem, size = 0x4, offset = 0x4, fixed_abs, tag = 'smem constant byte address 0x4 - core index']
  #allocation1 [shape = 'u32[72,128]{1,0:T(1,128)}', space=vmem, size = 0x9000, scoped, tag = 'internal scratch']
  %s0 = inlined_call_operand.vmem [shape: f32[2,26,128], index: 0, kind: input, shape index: {}]
  %s1 = inlined_call_operand.hbm [shape: bf16[3,128,128], index: 1, kind: input, shape index: {}]
  %s2 = inlined_call_operand.hbm [shape: f32[1,8,128], index: 2, kind: output, shape index: {0}]
  %s3 = inlined_call_operand.hbm [shape: f32[1,8,128], index: 3, kind: output, shape index: {1}]
  %4 = xla_tuple %s2, %s3
  %s5 = sld [smem:[#allocation0]]
  $region30: #{tpu_custom_call.1} parent=0
    _
  %s7 = ssub.s32 1, %s5
  %s8 = scalar_select 0, %s7, %s5
  $region1: #{tpu_custom_call.1} parent=0
    #allocation2 [shape = 'u8[98304]{0}', space=vmem, size = 0x18000, scoped, tag = 'input window, operand 1, single buffered']
    #allocation3 [shape = 's32[1]{0}', space=sflag, size = 0x4, scoped, tag = 'scoped memory for tpu_custom_call.1']
    #allocation4 [shape = 's32[1]{0}', space=sflag, size = 0x4, scoped, tag = 'scoped memory for tpu_custom_call.1']
    #allocation5 [shape = 'u8[4096]{0}', space=vmem, size = 0x1000, scoped, tag = 'output window, operand 0, single buffered']
    #allocation6 [shape = 'u8[4096]{0}', space=vmem, size = 0x1000, scoped, tag = 'output window, operand 1, single buffered']
    #allocation7 [shape = 's32[1]{0}', space=sflag, size = 0x4, scoped, tag = 'scoped memory for tpu_custom_call.1']
    %9 = vsyncpa [#allocation3], 0
    %10 = vsyncpa [#allocation4], 0
    %11 = vsyncpa [#allocation7], 0
    // Predicated region
    $region2: #{tpu_custom_call.1} parent=1 // pred_check
      _
    $region3: #{tpu_custom_call.1} parent=1 // pred_check_branch
      %13 = sbr.rel (0) target = $region5
    $region4: #{tpu_custom_call.1} parent=1 // pred_region
      _
    $region5: #{tpu_custom_call.1} parent=1 // pred_fallthru
      _
    // Predicated region
    $region6: #{tpu_custom_call.1} parent=1 // pred_check
      _
    $region7: #{tpu_custom_call.1} parent=1 // pred_check_branch
      %15 = sbr.rel (0) target = $region9
    $region8: #{tpu_custom_call.1} parent=1 // pred_region
      %17 = vsyncadd [#allocation3], 0
      %s18 = sshll.u32 %s1, 4
      %s19 = int_to_ptr.hbm [resolvable:$true] %s18
      %s20 = sshll.u32 [#allocation2], 4
      %s21 = int_to_ptr.vmem [resolvable:$true] %s20
      %26 = dma.hbm_to_vmem [thread:$0]  %s19, 3072, %s21, [#allocation3], 64, 64, 4
    $region9: #{tpu_custom_call.1} parent=1 // pred_fallthru
      _
    // Predicated region
    $region10: #{tpu_custom_call.1} parent=1 // pred_check
      _
    $region11: #{tpu_custom_call.1} parent=1 // pred_check_branch
      %28 = sbr.rel (0) target = $region13
    $region12: #{tpu_custom_call.1} parent=1 // pred_region
      %30 = dma.done [#allocation3], 3072
    $region13: #{tpu_custom_call.1} parent=1 // pred_fallthru
      _
    %v31 = vld [vmem:[%s0] sm:$0xff]
    %v32 = vld [vmem:[%s0 + $0x8] sm:$0xff]
    %v33 = vld [vmem:[%s0 + $0x10] sm:$0xff]
    %v34 = vld [vmem:[%s0 + $0x18] sm:$0x3]
    %v35 = vpack.c.bf16 %v31, %v31
    %v36 = vpack.c.bf16 %v32, %v32
    %v37 = vpack.c.bf16 %v33, %v33
    %v38 = vpack.c.bf16 %v34, %v34
    %v39 = vld [vmem:[#allocation2] sm:$0xf]
    %v40 = vld [vmem:[#allocation2 + $0x4] sm:$0xf]
    %v41 = vld [vmem:[#allocation2 + $0x8] sm:$0xf]
    %v42 = vld [vmem:[#allocation2 + $0xc] sm:$0xf]
    %v43 = vld [vmem:[#allocation2 + $0x10] sm:$0xf]
    %v44 = vld [vmem:[#allocation2 + $0x14] sm:$0xf]
    %v45 = vld [vmem:[#allocation2 + $0x18] sm:$0xf]
    %v46 = vld [vmem:[#allocation2 + $0x1c] sm:$0xf]
    %v47 = vld [vmem:[#allocation2 + $0x20] sm:$0xf]
    %v48 = vld [vmem:[#allocation2 + $0x24] sm:$0xf]
    %v49 = vld [vmem:[#allocation2 + $0x28] sm:$0xf]
    %v50 = vld [vmem:[#allocation2 + $0x2c] sm:$0xf]
    %v51 = vld [vmem:[#allocation2 + $0x30] sm:$0xf]
    %v52 = vld [vmem:[#allocation2 + $0x34] sm:$0xf]
    %v53 = vld [vmem:[#allocation2 + $0x38] sm:$0xf]
    %v54 = vld [vmem:[#allocation2 + $0x3c] sm:$0xf]
    %s55 = scalar_lea.vmem [#allocation2], 64
    %v56 = vld [vmem:[%s55] sm:$0xf]
    %v57 = vld [vmem:[%s55 + $0x4] sm:$0xf]
    %v58 = vld [vmem:[%s55 + $0x8] sm:$0xf]
    %v59 = vld [vmem:[%s55 + $0xc] sm:$0xf]
    %v60 = vld [vmem:[%s55 + $0x10] sm:$0xf]
    %v61 = vld [vmem:[%s55 + $0x14] sm:$0xf]
    %v62 = vld [vmem:[%s55 + $0x18] sm:$0xf]
    %v63 = vld [vmem:[%s55 + $0x1c] sm:$0xf]
    %v64 = vld [vmem:[%s55 + $0x20] sm:$0xf]
    %v65 = vld [vmem:[%s55 + $0x24] sm:$0xf]
    %v66 = vld [vmem:[%s55 + $0x28] sm:$0xf]
    %v67 = vld [vmem:[%s55 + $0x2c] sm:$0xf]
    %v68 = vld [vmem:[%s55 + $0x30] sm:$0xf]
    %v69 = vld [vmem:[%s55 + $0x34] sm:$0xf]
    %v70 = vld [vmem:[%s55 + $0x38] sm:$0xf]
    %v71 = vld [vmem:[%s55 + $0x3c] sm:$0xf]
    %v74 = vunpack.c.l.b16 %v36
    %v75 = vunpack.c.l.b16 %v37
    %v76 = vpack.c.b16 %v75, %v74
    %v94 = vunpack.c.l.b16 %v56
    %v95 = vunpack.c.l.b16 %v57
    %v96 = vunpack.c.l.b16 %v58
    %v97 = vunpack.c.l.b16 %v59
    %v98 = vunpack.c.l.b16 %v60
    %v99 = vunpack.c.l.b16 %v61
    %v100 = vunpack.c.l.b16 %v62
    %v101 = vunpack.c.l.b16 %v63
    %v102 = vunpack.c.l.b16 %v64
    %v103 = vunpack.c.l.b16 %v65
    %v104 = vunpack.c.l.b16 %v66
    %v105 = vunpack.c.l.b16 %v67
    %v106 = vunpack.c.l.b16 %v68
    %v107 = vunpack.c.l.b16 %v69
    %v108 = vunpack.c.l.b16 %v70
    %v109 = vunpack.c.l.b16 %v71
    %v110 = vpack.c.b16 %v95, %v94
    %v111 = vpack.c.b16 %v97, %v96
    %v112 = vpack.c.b16 %v99, %v98
    %v113 = vpack.c.b16 %v101, %v100
    %v114 = vpack.c.b16 %v103, %v102
    %v115 = vpack.c.b16 %v105, %v104
    %v116 = vpack.c.b16 %v107, %v106
    %v117 = vpack.c.b16 %v109, %v108
    %126 = vmatpush.bf16.msra.mxu0 %v117
    %127 = vmatpush.bf16.msra.mxu0 %v116
    %128 = vmatpush.bf16.msra.mxu0 %v115
    %129 = vmatpush.bf16.msra.mxu0 %v114
    %130 = vmatpush.bf16.msra.mxu0 %v113
    %131 = vmatpush.bf16.msra.mxu0 %v112
    %132 = vmatpush.bf16.msra.mxu0 %v111
    %133 = vmatpush.bf16.msra.mxu0 %v110
    %134 = vmatmul.bf16.gmra.mxu0 %v76
    %v135 = vpop.f32.mrf.mxu0
    %v136 = vadd.f32 0.0, %v135
    %v137 = vpop.f32.mrf.mxu0
    %v138 = vadd.f32 0.0, %v137
    %139 = vdwg.mxu0
    %v141 = vunpack.c.l.b16 %v35
    %v142 = vpack.c.b16 %v74, %v141
    %v143 = vpack.c.b16 %v75, %v75
    %vm144 = vsmask.f32 4352
    %v146 = vshrl.u32 %v142, 16
    %v148 = vrot.slane %v146, 3
    %v149 = vshll.u32 %v142, 16
    %v151 = vrot.slane %v149, 4
    %v152 = vor.u32 %v148, %v151
    %v154 = vshrl.u32 %v143, 16
    %v156 = vrot.slane %v154, 3
    %v157 = vshll.u32 %v143, 16
    %v159 = vrot.slane %v157, 4
    %v160 = vor.u32 %v156, %v159
    %v161 = vsel %vm144, %v152, %v160
    %v179 = vunpack.c.l.b16 %v39
    %v180 = vunpack.c.l.b16 %v40
    %v181 = vunpack.c.l.b16 %v41
    %v182 = vunpack.c.l.b16 %v42
    %v183 = vunpack.c.l.b16 %v43
    %v184 = vunpack.c.l.b16 %v44
    %v185 = vunpack.c.l.b16 %v45
    %v186 = vunpack.c.l.b16 %v46
    %v187 = vunpack.c.l.b16 %v47
    %v188 = vunpack.c.l.b16 %v48
    %v189 = vunpack.c.l.b16 %v49
    %v190 = vunpack.c.l.b16 %v50
    %v191 = vunpack.c.l.b16 %v51
    %v192 = vunpack.c.l.b16 %v52
    %v193 = vunpack.c.l.b16 %v53
    %v194 = vunpack.c.l.b16 %v54
    %v195 = vpack.c.b16 %v180, %v179
    %v196 = vpack.c.b16 %v182, %v181
    %v197 = vpack.c.b16 %v184, %v183
    %v198 = vpack.c.b16 %v186, %v185
    %v199 = vpack.c.b16 %v188, %v187
    %v200 = vpack.c.b16 %v190, %v189
    %v201 = vpack.c.b16 %v192, %v191
    %v202 = vpack.c.b16 %v194, %v193
    %211 = vmatpush.bf16.msra.mxu0 %v202
    %212 = vmatpush.bf16.msra.mxu0 %v201
    %213 = vmatpush.bf16.msra.mxu0 %v200
    %214 = vmatpush.bf16.msra.mxu0 %v199
    %215 = vmatpush.bf16.msra.mxu0 %v198
    %216 = vmatpush.bf16.msra.mxu0 %v197
    %217 = vmatpush.bf16.msra.mxu0 %v196
    %218 = vmatpush.bf16.msra.mxu0 %v195
    %219 = vmatmul.bf16.gmra.mxu0 %v161
    %v220 = vpop.f32.mrf.mxu0
    %v221 = vadd.f32 %v136, %v220
    %v222 = vpop.f32.mrf.mxu0
    %v223 = vadd.f32 %v138, %v222
    %224 = vdwg.mxu0
    %s225 = scalar_lea.vmem [#allocation2], 128
    %v226 = vld [vmem:[%s225] sm:$0xf]
    %v227 = vld [vmem:[%s225 + $0x4] sm:$0xf]
    %v228 = vld [vmem:[%s225 + $0x8] sm:$0xf]
    %v229 = vld [vmem:[%s225 + $0xc] sm:$0xf]
    %v230 = vld [vmem:[%s225 + $0x10] sm:$0xf]
    %v231 = vld [vmem:[%s225 + $0x14] sm:$0xf]
    %v232 = vld [vmem:[%s225 + $0x18] sm:$0xf]
    %v233 = vld [vmem:[%s225 + $0x1c] sm:$0xf]
    %v234 = vld [vmem:[%s225 + $0x20] sm:$0xf]
    %v235 = vld [vmem:[%s225 + $0x24] sm:$0xf]
    %v236 = vld [vmem:[%s225 + $0x28] sm:$0xf]
    %v237 = vld [vmem:[%s225 + $0x2c] sm:$0xf]
    %v238 = vld [vmem:[%s225 + $0x30] sm:$0xf]
    %v239 = vld [vmem:[%s225 + $0x34] sm:$0xf]
    %v240 = vld [vmem:[%s225 + $0x38] sm:$0xf]
    %v241 = vld [vmem:[%s225 + $0x3c] sm:$0xf]
    %v243 = vunpack.c.l.b16 %v38
    %v244 = vpack.c.b16 %v243, %v243
    %vm245 = vsmask.f32 7424
    %v247 = vshrl.u32 %v76, 16
    %v249 = vshll.u32 %v76, 16
    %v251 = vrot.slane %v249, 1
    %v252 = vor.u32 %v247, %v251
    %v254 = vshll.u32 %v244, 16
    %v256 = vrot.slane %v254, 1
    %v257 = vsel %vm245, %v252, %v256
    %v275 = vunpack.c.l.b16 %v226
    %v276 = vunpack.c.l.b16 %v227
    %v277 = vunpack.c.l.b16 %v228
    %v278 = vunpack.c.l.b16 %v229
    %v279 = vunpack.c.l.b16 %v230
    %v280 = vunpack.c.l.b16 %v231
    %v281 = vunpack.c.l.b16 %v232
    %v282 = vunpack.c.l.b16 %v233
    %v283 = vunpack.c.l.b16 %v234
    %v284 = vunpack.c.l.b16 %v235
    %v285 = vunpack.c.l.b16 %v236
    %v286 = vunpack.c.l.b16 %v237
    %v287 = vunpack.c.l.b16 %v238
    %v288 = vunpack.c.l.b16 %v239
    %v289 = vunpack.c.l.b16 %v240
    %v290 = vunpack.c.l.b16 %v241
    %v291 = vpack.c.b16 %v276, %v275
    %v292 = vpack.c.b16 %v278, %v277
    %v293 = vpack.c.b16 %v280, %v279
    %v294 = vpack.c.b16 %v282, %v281
    %v295 = vpack.c.b16 %v284, %v283
    %v296 = vpack.c.b16 %v286, %v285
    %v297 = vpack.c.b16 %v288, %v287
    %v298 = vpack.c.b16 %v290, %v289
    %307 = vmatpush.bf16.msra.mxu0 %v298
    %308 = vmatpush.bf16.msra.mxu0 %v297
    %309 = vmatpush.bf16.msra.mxu0 %v296
    %310 = vmatpush.bf16.msra.mxu0 %v295
    %311 = vmatpush.bf16.msra.mxu0 %v294
    %312 = vmatpush.bf16.msra.mxu0 %v293
    %313 = vmatpush.bf16.msra.mxu0 %v292
    %314 = vmatpush.bf16.msra.mxu0 %v291
    %315 = vmatmul.bf16.gmra.mxu0 %v257
    %v316 = vpop.f32.mrf.mxu0
    %v317 = vadd.f32 0.0, %v316
    %v318 = vpop.f32.mrf.mxu0
    %v319 = vadd.f32 0.0, %v318
    %320 = vdwg.mxu0
    %v321 = vadd.f32 %v221, %v317
    %v322 = vadd.f32 %v223, %v319
    %v323 = vadd.f32 %v321, %v322
    %v324 = vrot.slane %v323, 4
    %v325 = vadd.f32 %v323, %v324
    %v326 = vrot.slane %v325, 2
    %v327 = vadd.f32 %v325, %v326
    %v328 = vrot.slane %v327, 1
    %v329 = vadd.f32 %v327, %v328
    %v330 = vmul.f32 %v321, %v321
    %v331 = vmul.f32 %v322, %v322
    %v332 = vadd.f32 %v330, %v331
    %v333 = vrot.slane %v332, 4
    %v334 = vadd.f32 %v332, %v333
    %v335 = vrot.slane %v334, 2
    %v336 = vadd.f32 %v334, %v335
    %v337 = vrot.slane %v336, 1
    %v338 = vadd.f32 %v336, %v337
    %s339 = scalar_lea.vmem %s0, 32
    %v340 = vld [vmem:[%s339] sm:$0xff]
    %v341 = vld [vmem:[%s339 + $0x8] sm:$0xff]
    %v342 = vld [vmem:[%s339 + $0x10] sm:$0xff]
    %v343 = vld [vmem:[%s339 + $0x18] sm:$0x3]
    %v344 = vpack.c.bf16 %v340, %v340
    %v345 = vpack.c.bf16 %v341, %v341
    %v346 = vpack.c.bf16 %v342, %v342
    %v347 = vpack.c.bf16 %v343, %v343
    %v350 = vunpack.c.l.b16 %v345
    %v351 = vunpack.c.l.b16 %v346
    %v352 = vpack.c.b16 %v351, %v350
    %354 = vmatpush.bf16.msra.mxu0 %v117
    %355 = vmatpush.bf16.msra.mxu0 %v116
    %356 = vmatpush.bf16.msra.mxu0 %v115
    %357 = vmatpush.bf16.msra.mxu0 %v114
    %358 = vmatpush.bf16.msra.mxu0 %v113
    %359 = vmatpush.bf16.msra.mxu0 %v112
    %360 = vmatpush.bf16.msra.mxu0 %v111
    %361 = vmatpush.bf16.msra.mxu0 %v110
    %362 = vmatmul.bf16.gmra.mxu0 %v352
    %v363 = vpop.f32.mrf.mxu0
    %v364 = vadd.f32 0.0, %v363
    %v365 = vpop.f32.mrf.mxu0
    %v366 = vadd.f32 0.0, %v365
    %367 = vdwg.mxu0
    %v369 = vunpack.c.l.b16 %v344
    %v370 = vpack.c.b16 %v350, %v369
    %v371 = vpack.c.b16 %v351, %v351
    %v373 = vshrl.u32 %v370, 16
    %v375 = vrot.slane %v373, 3
    %v376 = vshll.u32 %v370, 16
    %v378 = vrot.slane %v376, 4
    %v379 = vor.u32 %v375, %v378
    %v381 = vshrl.u32 %v371, 16
    %v383 = vrot.slane %v381, 3
    %v384 = vshll.u32 %v371, 16
    %v386 = vrot.slane %v384, 4
    %v387 = vor.u32 %v383, %v386
    %v388 = vsel %vm144, %v379, %v387
    %390 = vmatpush.bf16.msra.mxu0 %v202
    %391 = vmatpush.bf16.msra.mxu0 %v201
    %392 = vmatpush.bf16.msra.mxu0 %v200
    %393 = vmatpush.bf16.msra.mxu0 %v199
    %394 = vmatpush.bf16.msra.mxu0 %v198
    %395 = vmatpush.bf16.msra.mxu0 %v197
    %396 = vmatpush.bf16.msra.mxu0 %v196
    %397 = vmatpush.bf16.msra.mxu0 %v195
    %398 = vmatmul.bf16.gmra.mxu0 %v388
    %v399 = vpop.f32.mrf.mxu0
    %v400 = vadd.f32 %v364, %v399
    %v401 = vpop.f32.mrf.mxu0
    %v402 = vadd.f32 %v366, %v401
    %403 = vdwg.mxu0
    %v405 = vunpack.c.l.b16 %v347
    %v406 = vpack.c.b16 %v405, %v405
    %v408 = vshrl.u32 %v352, 16
    %v410 = vshll.u32 %v352, 16
    %v412 = vrot.slane %v410, 1
    %v413 = vor.u32 %v408, %v412
    %v415 = vshll.u32 %v406, 16
    %v417 = vrot.slane %v415, 1
    %v418 = vsel %vm245, %v413, %v417
    %420 = vmatpush.bf16.msra.mxu0 %v298
    %421 = vmatpush.bf16.msra.mxu0 %v297
    %422 = vmatpush.bf16.msra.mxu0 %v296
    %423 = vmatpush.bf16.msra.mxu0 %v295
    %424 = vmatpush.bf16.msra.mxu0 %v294
    %425 = vmatpush.bf16.msra.mxu0 %v293
    %426 = vmatpush.bf16.msra.mxu0 %v292
    %427 = vmatpush.bf16.msra.mxu0 %v291
    %428 = vmatmul.bf16.gmra.mxu0 %v418
    %v429 = vpop.f32.mrf.mxu0
    %v430 = vadd.f32 0.0, %v429
    %v431 = vpop.f32.mrf.mxu0
    %v432 = vadd.f32 0.0, %v431
    %433 = vdwg.mxu0
    %v434 = vadd.f32 %v400, %v430
    %v435 = vadd.f32 %v402, %v432
    %v436 = vadd.f32 %v434, %v435
    %v437 = vrot.slane %v436, 4
    %v438 = vadd.f32 %v436, %v437
    %v439 = vrot.slane %v438, 2
    %v440 = vadd.f32 %v438, %v439
    %v441 = vrot.slane %v440, 1
    %v442 = vadd.f32 %v440, %v441
    %v443 = vmul.f32 %v434, %v434
    %v444 = vmul.f32 %v435, %v435
    %v445 = vadd.f32 %v443, %v444
    %v446 = vrot.slane %v445, 4
    %v447 = vadd.f32 %v445, %v446
    %v448 = vrot.slane %v447, 2
    %v449 = vadd.f32 %v447, %v448
    %v450 = vrot.slane %v449, 1
    %v451 = vadd.f32 %v449, %v450
    %v452 = vadd.f32 %v329, %v442
    %v453 = vadd.f32 %v338, %v451
    %454 = vst [vmem:[#allocation5] sm:$0xff] %v452
    %455 = vst [vmem:[#allocation6] sm:$0xff] %v453
    // Predicated region
    $region14: #{tpu_custom_call.1} parent=1 // pred_check
      _
    $region15: #{tpu_custom_call.1} parent=1 // pred_check_branch
      %457 = sbr.rel (0) target = $region17
    $region16: #{tpu_custom_call.1} parent=1 // pred_region
      %459 = vsyncadd [#allocation4], 0
      %s461 = sshll.u32 [#allocation5], 4
      %s462 = int_to_ptr.vmem [resolvable:$true] %s461
      %s463 = sshll.u32 %s2, 4
      %s464 = int_to_ptr.hbm [resolvable:$true] %s463
      %466 = dma.vmem_to_hbm [thread:$0]  %s462, 128, %s464, [#allocation4]
    $region17: #{tpu_custom_call.1} parent=1 // pred_fallthru
      _
    // Predicated region
    $region18: #{tpu_custom_call.1} parent=1 // pred_check
      _
    $region19: #{tpu_custom_call.1} parent=1 // pred_check_branch
      %468 = sbr.rel (0) target = $region21
    $region20: #{tpu_custom_call.1} parent=1 // pred_region
      %470 = vsyncadd [#allocation7], 0
      %s472 = sshll.u32 [#allocation6], 4
      %s473 = int_to_ptr.vmem [resolvable:$true] %s472
      %s474 = sshll.u32 %s3, 4
      %s475 = int_to_ptr.hbm [resolvable:$true] %s474
      %477 = dma.vmem_to_hbm [thread:$0]  %s473, 128, %s475, [#allocation7]
    $region21: #{tpu_custom_call.1} parent=1 // pred_fallthru
      _
    // Predicated region
    $region22: #{tpu_custom_call.1} parent=1 // pred_check
      _
    $region23: #{tpu_custom_call.1} parent=1 // pred_check_branch
      %479 = sbr.rel (0) target = $region25
    $region24: #{tpu_custom_call.1} parent=1 // pred_region
      %481 = dma.done [#allocation4], 128
    $region25: #{tpu_custom_call.1} parent=1 // pred_fallthru
      _
    // Predicated region
    $region26: #{tpu_custom_call.1} parent=1 // pred_check
      _
    $region27: #{tpu_custom_call.1} parent=1 // pred_check_branch
      %483 = sbr.rel (0) target = $region29
    $region28: #{tpu_custom_call.1} parent=1 // pred_region
      %485 = dma.done [#allocation7], 128
    $region29: #{tpu_custom_call.1} parent=1 // pred_fallthru
      _
    %486 = vsyncpa [#allocation3], 1
    %487 = vsyncpa [#allocation4], 1
    %488 = vsyncpa [#allocation7], 1

</llo_original>
